<compile_context>
chip_gen: v7x
topology: tpu7x:2x2x1
jax: 0.10.0
libtpu: 0.0.40
codegen_flags: <defaults>
</compile_context>

<pallas_src>
import functools

import jax
import jax.numpy as jnp
from jax import lax
from jax.experimental import pallas as pl
from jax.experimental.pallas import tpu as pltpu

HIDDEN = 128
TILE_B_MAX = 1024   # large-batch (replay buffer) tile; amortizes ~0.35us/step overhead
ROW_CHUNK = 256     # inner row chunk keeps f32 h1/h2 vreg pressure bounded


def _round_up(x, m):
    return ((x + m - 1) // m) * m


def _choose_tile_b(B):
    """Batch tile: big enough to amortize per-step overhead, small enough to
    give >= 2 grid steps (v7x megacore) for moderate batches."""
    if B <= 8:
        return B                        # single block equal to array dim (legal)
    if B < 16:
        return _round_up(B, 8)          # single 8-divisible block
    tile = min(TILE_B_MAX, _round_up((B + 1) // 2, 8))
    if tile > ROW_CHUNK:
        tile = min(TILE_B_MAX, _round_up(tile, ROW_CHUNK))
    return tile


def _qnet_kernel(x_ref, w1_ref, b1_ref, w2_ref, b2_ref, w3_ref, b3_ref, o_ref,
                 *, chunk, num_chunks):
    # Weights/biases: constant index_maps -> VMEM-resident across grid steps.
    w1 = w1_ref[...]
    b1 = b1_ref[...]
    w2 = w2_ref[...]
    b2 = b2_ref[...]
    w3 = w3_ref[...]
    b3 = b3_ref[...]

    def row_block(c, carry):
        r = pl.multiple_of(c * chunk, chunk)
        # x stays f32 end-to-end in HBM/VMEM; cast to bf16 on the VPU (free slack)
        # right before the MXU. Accumulate / bias / ReLU in f32.
        x = x_ref[pl.ds(r, chunk), :].astype(jnp.bfloat16)
        h1 = jnp.dot(x, w1, preferred_element_type=jnp.float32)
        h1 = jnp.maximum(h1 + b1, 0.0)
        h2 = jnp.dot(h1.astype(jnp.bfloat16), w2,
                     preferred_element_type=jnp.float32)
        h2 = jnp.maximum(h2 + b2, 0.0)
        out = jnp.dot(h2.astype(jnp.bfloat16), w3,
                      preferred_element_type=jnp.float32)
        o_ref[pl.ds(r, chunk), :] = (out + b3).astype(o_ref.dtype)
        return carry

    if num_chunks == 1:
        row_block(0, None)
    else:
        lax.fori_loop(0, num_chunks, row_block, None, unroll=True)


def prepare_params(w1, b1, w2, b2, w3, b3):
    """One-time param prep (hoisted out of the per-call forward):
    bf16 matmul weights for the MXU, f32 biases for the VPU epilogue."""
    return (w1.astype(jnp.bfloat16), b1,
            w2.astype(jnp.bfloat16), b2,
            w3.astype(jnp.bfloat16), b3)


@jax.jit
def qnetwork_forward(x, w1_bf, b1, w2_bf, b2, w3_bf, b3):
    """Forward pass of QNetwork.

    x:     (B, input_size) float32
    w1_bf: (input_size, 128) bf16, b1: (1, 128) f32
    w2_bf: (128, 128) bf16,        b2: (1, 128) f32
    w3_bf: (128, output_size) bf16 b3: (1, output_size) f32
    returns (B, output_size) float32
    """
    B, in_size = x.shape
    out_size = w3_bf.shape[1]

    tile_b = _choose_tile_b(B)
    grid_b = pl.cdiv(B, tile_b)
    if tile_b > ROW_CHUNK and tile_b % ROW_CHUNK == 0:
        chunk, num_chunks = ROW_CHUNK, tile_b // ROW_CHUNK
    else:
        chunk, num_chunks = tile_b, 1

    batch_spec = lambda cols: pl.BlockSpec((tile_b, cols), lambda i: (i, 0))
    resident = lambda shape: pl.BlockSpec(shape, lambda i: (0, 0))

    flops = 2 * B * (in_size * HIDDEN + HIDDEN * HIDDEN + HIDDEN * out_size)
    bytes_accessed = (
        B * in_size * 4                                                  # x (f32)
        + (in_size * HIDDEN + HIDDEN * HIDDEN + HIDDEN * out_size) * 2  # bf16 weights
        + (HIDDEN + HIDDEN + out_size) * 4                              # f32 biases
        + B * out_size * 4                                              # output (f32)
    )

    kernel = functools.partial(_qnet_kernel, chunk=chunk, num_chunks=num_chunks)

    return pl.pallas_call(
        kernel,
        out_shape=jax.ShapeDtypeStruct((B, out_size), jnp.float32),
        grid=(grid_b,),
        in_specs=[
            batch_spec(in_size),            # x tile, streamed / double-buffered
            resident((in_size, HIDDEN)),    # w1 (VMEM-resident across steps)
            resident((1, HIDDEN)),          # b1
            resident((HIDDEN, HIDDEN)),     # w2
            resident((1, HIDDEN)),          # b2
            resident((HIDDEN, out_size)),   # w3 (no padding; last dim = full array dim)
            resident((1, out_size)),        # b3
        ],
        out_specs=batch_spec(out_size),     # direct (B, out_size) output, no post-slice
        compiler_params=pltpu.CompilerParams(
            dimension_semantics=("parallel",),  # shard batch tiles across TCs (v7x)
        ),
        cost_estimate=pl.CostEstimate(
            flops=flops, transcendentals=0, bytes_accessed=bytes_accessed),
    )(x, w1_bf, b1, w2_bf, b2, w3_bf, b3)


def init_params(key, input_size, output_size):
    """Deterministic PyTorch-style (uniform +/- 1/sqrt(fan_in)) initialization."""
    ks = jax.random.split(key, 6)

    def linear(kw, kb, fan_in, fan_out):
        bound = 1.0 / jnp.sqrt(fan_in)
        w = jax.random.uniform(kw, (fan_in, fan_out), jnp.float32, -bound, bound)
        b = jax.random.uniform(kb, (1, fan_out), jnp.float32, -bound, bound)
        return w, b

    w1, b1 = linear(ks[0], ks[1], input_size, HIDDEN)
    w2, b2 = linear(ks[2], ks[3], HIDDEN, HIDDEN)
    w3, b3 = linear(ks[4], ks[5], HIDDEN, output_size)
    return w1, b1, w2, b2, w3, b3


if __name__ == "__main__":
    key = jax.random.PRNGKey(0)
    k_x, k_p, k_x2 = jax.random.split(key, 3)

    input_size = 16   # e.g. flattened state observation
    output_size = 4   # e.g. number of actions

    params = init_params(k_p, input_size, output_size)
    w1, b1, w2, b2, w3, b3 = params
    prepped = prepare_params(*params)   # one-time bf16 weight prep

    def ref_fwd(x):
        h = jnp.maximum(x @ w1 + b1, 0.0)
        h = jnp.maximum(h @ w2 + b2, 0.0)
        return h @ w3 + b3

    def ref_fwd_bf(x):
        bf = lambda a: a.astype(jnp.bfloat16).astype(jnp.float32)
        h = jnp.maximum(bf(x) @ bf(w1) + b1, 0.0)
        h = jnp.maximum(bf(h) @ bf(w2) + b2, 0.0)
        return bf(h) @ bf(w3) + b3

    # Small inference-style batch.
    x = jax.random.normal(k_x, (8, input_size), dtype=jnp.float32)
    out = jax.block_until_ready(qnetwork_forward(x, *prepped))
    assert out.shape == (8, output_size)
    assert jnp.allclose(out, ref_fwd_bf(x), atol=1e-4, rtol=1e-4)
    assert jnp.allclose(out, ref_fwd(x), atol=2e-2, rtol=2e-2)

    # Batch that is not a multiple of the tile (partial last block + 2-step grid).
    x2 = jax.random.normal(k_x2, (20, input_size), dtype=jnp.float32)
    out2 = jax.block_until_ready(qnetwork_forward(x2, *prepped))
    assert out2.shape == (20, output_size)
    assert jnp.allclose(out2, ref_fwd_bf(x2), atol=1e-4, rtol=1e-4)
    assert jnp.allclose(out2, ref_fwd(x2), atol=2e-2, rtol=2e-2)

    print("KERNEL_OK")
</pallas_src>

<mosaic_0001>
module attributes {stable_mosaic.version = 11 : i64} {
  func.func @_qnet_kernel(%arg0: i32, %arg1: memref<8x16xf32, #tpu.memory_space<vmem>>, %arg2: memref<16x128xbf16, #tpu.memory_space<vmem>>, %arg3: memref<1x128xf32, #tpu.memory_space<vmem>>, %arg4: memref<128x128xbf16, #tpu.memory_space<vmem>>, %arg5: memref<1x128xf32, #tpu.memory_space<vmem>>, %arg6: memref<128x4xbf16, #tpu.memory_space<vmem>>, %arg7: memref<1x4xf32, #tpu.memory_space<vmem>>, %arg8: memref<8x4xf32, #tpu.memory_space<vmem>>) attributes {dimension_semantics = [#tpu.dimension_semantics<parallel>], iteration_bounds = array<i64: 1>, scalar_prefetch = 0 : i64, scratch_operands = 0 : i64, tpu.core_type = #tpu.core_type<tc>, window_params = [{transform_indices = @transform_0, window_bounds = array<i64: 8, 16>}, {pipeline_mode = #tpu.pipeline_mode<synchronous>, transform_indices = @transform_1, window_bounds = array<i64: 16, 128>}, {pipeline_mode = #tpu.pipeline_mode<synchronous>, transform_indices = @transform_2, window_bounds = array<i64: 1, 128>}, {pipeline_mode = #tpu.pipeline_mode<synchronous>, transform_indices = @transform_3, window_bounds = array<i64: 128, 128>}, {pipeline_mode = #tpu.pipeline_mode<synchronous>, transform_indices = @transform_4, window_bounds = array<i64: 1, 128>}, {pipeline_mode = #tpu.pipeline_mode<synchronous>, transform_indices = @transform_5, window_bounds = array<i64: 128, 4>}, {pipeline_mode = #tpu.pipeline_mode<synchronous>, transform_indices = @transform_6, window_bounds = array<i64: 1, 4>}, {transform_indices = @transform_7, window_bounds = array<i64: 8, 4>}]} {
    %c0 = arith.constant 0 : index
    %c0_0 = arith.constant 0 : index
    %0 = vector.load %arg2[%c0, %c0_0] : memref<16x128xbf16, #tpu.memory_space<vmem>>, vector<16x128xbf16>
    %c0_1 = arith.constant 0 : index
    %c0_2 = arith.constant 0 : index
    %1 = vector.load %arg3[%c0_1, %c0_2] : memref<1x128xf32, #tpu.memory_space<vmem>>, vector<1x128xf32>
    %c0_3 = arith.constant 0 : index
    %c0_4 = arith.constant 0 : index
    %2 = vector.load %arg4[%c0_3, %c0_4] : memref<128x128xbf16, #tpu.memory_space<vmem>>, vector<128x128xbf16>
    %c0_5 = arith.constant 0 : index
    %c0_6 = arith.constant 0 : index
    %3 = vector.load %arg5[%c0_5, %c0_6] : memref<1x128xf32, #tpu.memory_space<vmem>>, vector<1x128xf32>
    %c0_7 = arith.constant 0 : index
    %c0_8 = arith.constant 0 : index
    %4 = vector.load %arg6[%c0_7, %c0_8] : memref<128x4xbf16, #tpu.memory_space<vmem>>, vector<128x4xbf16>
    %c0_9 = arith.constant 0 : index
    %c0_10 = arith.constant 0 : index
    %5 = vector.load %arg7[%c0_9, %c0_10] : memref<1x4xf32, #tpu.memory_space<vmem>>, vector<1x4xf32>
    %c0_i32 = arith.constant 0 : i32
    %6 = tpu.assume_multiple %c0_i32, 8 : i32
    %7 = arith.index_cast %6 : i32 to index
    %c0_11 = arith.constant 0 : index
    %8 = vector.load %arg1[%7, %c0_11] : memref<8x16xf32, #tpu.memory_space<vmem>>, vector<8x16xf32>
    %9 = arith.truncf %8 : vector<8x16xf32> to vector<8x16xbf16>
    %cst = arith.constant dense<0.000000e+00> : vector<8x128xf32>
    %10 = tpu.matmul %9, %0, %cst {dimension_numbers = #tpu.dot_dimension_numbers<[1], [0], [0], [1], [0, 0, 1, 1], [], []>} : vector<8x16xbf16>, vector<16x128xbf16>, vector<8x128xf32> -> vector<8x128xf32>
    %11 = vector.broadcast %1 : vector<1x128xf32> to vector<8x128xf32>
    %12 = arith.addf %10, %11 : vector<8x128xf32>
    %cst_12 = arith.constant 0.000000e+00 : f32
    %13 = vector.broadcast %cst_12 : f32 to vector<8x128xf32>
    %14 = arith.maximumf %12, %13 : vector<8x128xf32>
    %15 = arith.truncf %14 : vector<8x128xf32> to vector<8x128xbf16>
    %cst_13 = arith.constant dense<0.000000e+00> : vector<8x128xf32>
    %16 = tpu.matmul %15, %2, %cst_13 {dimension_numbers = #tpu.dot_dimension_numbers<[1], [0], [0], [1], [0, 0, 1, 1], [], []>} : vector<8x128xbf16>, vector<128x128xbf16>, vector<8x128xf32> -> vector<8x128xf32>
    %17 = vector.broadcast %3 : vector<1x128xf32> to vector<8x128xf32>
    %18 = arith.addf %16, %17 : vector<8x128xf32>
    %cst_14 = arith.constant 0.000000e+00 : f32
    %19 = vector.broadcast %cst_14 : f32 to vector<8x128xf32>
    %20 = arith.maximumf %18, %19 : vector<8x128xf32>
    %21 = arith.truncf %20 : vector<8x128xf32> to vector<8x128xbf16>
    %cst_15 = arith.constant dense<0.000000e+00> : vector<8x4xf32>
    %22 = tpu.matmul %21, %4, %cst_15 {dimension_numbers = #tpu.dot_dimension_numbers<[1], [0], [0], [1], [0, 0, 1, 1], [], []>} : vector<8x128xbf16>, vector<128x4xbf16>, vector<8x4xf32> -> vector<8x4xf32>
    %23 = vector.broadcast %5 : vector<1x4xf32> to vector<8x4xf32>
    %24 = arith.addf %22, %23 : vector<8x4xf32>
    %25 = arith.index_cast %6 : i32 to index
    %c0_16 = arith.constant 0 : index
    %26 = vector.load %arg8[%25, %c0_16] : memref<8x4xf32, #tpu.memory_space<vmem>>, vector<8x4xf32>
    tpu.vector_store %arg8[%25, %c0_16], %24 {strides = array<i32>} : memref<8x4xf32, #tpu.memory_space<vmem>>, vector<8x4xf32>,
    return
  }
  func.func @transform_0(%arg0: i32) -> (i32, i32) {
    %c0_i32 = arith.constant 0 : i32
    %c0_i32_0 = arith.constant 0 : i32
    return %arg0, %c0_i32 : i32, i32
  }
  func.func @transform_1(%arg0: i32) -> (i32, i32) {
    %c0_i32 = arith.constant 0 : i32
    %c0_i32_0 = arith.constant 0 : i32
    %c0_i32_1 = arith.constant 0 : i32
    return %c0_i32, %c0_i32_0 : i32, i32
  }
  func.func @transform_2(%arg0: i32) -> (i32, i32) {
    %c0_i32 = arith.constant 0 : i32
    %c0_i32_0 = arith.constant 0 : i32
    %c0_i32_1 = arith.constant 0 : i32
    return %c0_i32, %c0_i32_0 : i32, i32
  }
  func.func @transform_3(%arg0: i32) -> (i32, i32) {
    %c0_i32 = arith.constant 0 : i32
    %c0_i32_0 = arith.constant 0 : i32
    %c0_i32_1 = arith.constant 0 : i32
    return %c0_i32, %c0_i32_0 : i32, i32
  }
  func.func @transform_4(%arg0: i32) -> (i32, i32) {
    %c0_i32 = arith.constant 0 : i32
    %c0_i32_0 = arith.constant 0 : i32
    %c0_i32_1 = arith.constant 0 : i32
    return %c0_i32, %c0_i32_0 : i32, i32
  }
  func.func @transform_5(%arg0: i32) -> (i32, i32) {
    %c0_i32 = arith.constant 0 : i32
    %c0_i32_0 = arith.constant 0 : i32
    %c0_i32_1 = arith.constant 0 : i32
    return %c0_i32, %c0_i32_0 : i32, i32
  }
  func.func @transform_6(%arg0: i32) -> (i32, i32) {
    %c0_i32 = arith.constant 0 : i32
    %c0_i32_0 = arith.constant 0 : i32
    %c0_i32_1 = arith.constant 0 : i32
    return %c0_i32, %c0_i32_0 : i32, i32
  }
  func.func @transform_7(%arg0: i32) -> (i32, i32) {
    %c0_i32 = arith.constant 0 : i32
    %c0_i32_0 = arith.constant 0 : i32
    return %arg0, %c0_i32 : i32, i32
  }
}

</mosaic_0001>

<llo_original>
// kernel: qnetwork_forward.1
$region0: #{qnetwork_forward.1}
  #allocation0 [shape = 'u32[]', space=smem, size = 0x4, offset = 0x4, fixed_abs, tag = 'smem constant byte address 0x4 - core index']
  #allocation1 [shape = 'u32[144,128]{1,0:T(1,128)}', space=vmem, size = 0x12000, scoped, tag = 'internal scratch']
  %s0 = inlined_call_operand.vmem [shape: f32[8,16], index: 0, kind: input, shape index: {}]
  %s1 = inlined_call_operand.hbm [shape: bf16[16,128], index: 1, kind: input, shape index: {}]
  %s2 = inlined_call_operand.vmem [shape: f32[1,128], index: 2, kind: input, shape index: {}]
  %s3 = inlined_call_operand.vmem [shape: bf16[128,128], index: 3, kind: input, shape index: {}]
  %s4 = inlined_call_operand.vmem [shape: f32[1,128], index: 4, kind: input, shape index: {}]
  %s5 = inlined_call_operand.vmem [shape: bf16[128,4], index: 5, kind: input, shape index: {}]
  %s6 = inlined_call_operand.vmem [shape: f32[1,4], index: 6, kind: input, shape index: {}]
  %s7 = inlined_call_operand.vmem [shape: f32[8,4], index: 7, kind: output, shape index: {}]
  %s8 = sld [smem:[#allocation0]]
  $region42: #{qnetwork_forward.1} parent=0
    _
  %s10 = ssub.s32 1, %s8
  %s11 = scalar_select 0, %s10, %s8
  $region1: #{qnetwork_forward.1} parent=0
    #allocation2 [shape = 'u8[4096]{0}', space=vmem, size = 0x1000, scoped, tag = 'input window, operand 1, single buffered']
    #allocation3 [shape = 's32[1]{0}', space=sflag, size = 0x4, scoped, tag = 'scoped memory for qnetwork_forward.1']
    %12 = vsyncpa [#allocation3], 0
    // Predicated region
    $region2: #{qnetwork_forward.1} parent=1 // pred_check
      _
    $region3: #{qnetwork_forward.1} parent=1 // pred_check_branch
      %14 = sbr.rel (0) target = $region5
    $region4: #{qnetwork_forward.1} parent=1 // pred_region
      _
    $region5: #{qnetwork_forward.1} parent=1 // pred_fallthru
      _
    // Predicated region
    $region6: #{qnetwork_forward.1} parent=1 // pred_check
      _
    $region7: #{qnetwork_forward.1} parent=1 // pred_check_branch
      %16 = sbr.rel (0) target = $region9
    $region8: #{qnetwork_forward.1} parent=1 // pred_region
      %s18 = ssub.s32 128, 128
      %19 = vsyncadd [#allocation3], %s18
      %s20 = sshll.u32 [#allocation2], 4
      %s21 = int_to_ptr.vmem [resolvable:$true] %s20
      %26 = dma.hbm_to_vmem [thread:$0]  %s1, 128, %s21, [#allocation3], 64, 64, 4
    $region9: #{qnetwork_forward.1} parent=1 // pred_fallthru
      _
    // Predicated region
    $region10: #{qnetwork_forward.1} parent=1 // pred_check
      _
    $region11: #{qnetwork_forward.1} parent=1 // pred_check_branch
      %28 = sbr.rel (0) target = $region13
    $region12: #{qnetwork_forward.1} parent=1 // pred_region
      _
    $region13: #{qnetwork_forward.1} parent=1 // pred_fallthru
      _
    // Predicated region
    $region14: #{qnetwork_forward.1} parent=1 // pred_check
      _
    $region15: #{qnetwork_forward.1} parent=1 // pred_check_branch
      %30 = sbr.rel (0) target = $region17
    $region16: #{qnetwork_forward.1} parent=1 // pred_region
      _
    $region17: #{qnetwork_forward.1} parent=1 // pred_fallthru
      _
    // Predicated region
    $region18: #{qnetwork_forward.1} parent=1 // pred_check
      _
    $region19: #{qnetwork_forward.1} parent=1 // pred_check_branch
      %32 = sbr.rel (0) target = $region21
    $region20: #{qnetwork_forward.1} parent=1 // pred_region
      _
    $region21: #{qnetwork_forward.1} parent=1 // pred_fallthru
      _
    // Predicated region
    $region22: #{qnetwork_forward.1} parent=1 // pred_check
      _
    $region23: #{qnetwork_forward.1} parent=1 // pred_check_branch
      %34 = sbr.rel (0) target = $region25
    $region24: #{qnetwork_forward.1} parent=1 // pred_region
      _
    $region25: #{qnetwork_forward.1} parent=1 // pred_fallthru
      _
    // Predicated region
    $region26: #{qnetwork_forward.1} parent=1 // pred_check
      _
    $region27: #{qnetwork_forward.1} parent=1 // pred_check_branch
      %36 = sbr.rel (0) target = $region29
    $region28: #{qnetwork_forward.1} parent=1 // pred_region
      _
    $region29: #{qnetwork_forward.1} parent=1 // pred_fallthru
      _
    // Predicated region
    $region30: #{qnetwork_forward.1} parent=1 // pred_check
      _
    $region31: #{qnetwork_forward.1} parent=1 // pred_check_branch
      %38 = sbr.rel (0) target = $region33
    $region32: #{qnetwork_forward.1} parent=1 // pred_region
      %39 = dma.done [#allocation3], 128
    $region33: #{qnetwork_forward.1} parent=1 // pred_fallthru
      _
    %v41 = vld [vmem:[#allocation2] sm:$0xf]
    %v42 = vld [vmem:[#allocation2 + $0x4] sm:$0xf]
    %v43 = vld [vmem:[%s2] sm:$0x1]
    %v44 = vld [vmem:[%s3] sm:$0xf]
    %v45 = vld [vmem:[%s3 + $0x4] sm:$0xf]
    %v46 = vld [vmem:[%s3 + $0x8] sm:$0xf]
    %v47 = vld [vmem:[%s3 + $0xc] sm:$0xf]
    %v48 = vld [vmem:[%s3 + $0x10] sm:$0xf]
    %v49 = vld [vmem:[%s3 + $0x14] sm:$0xf]
    %v50 = vld [vmem:[%s3 + $0x18] sm:$0xf]
    %v51 = vld [vmem:[%s3 + $0x1c] sm:$0xf]
    %v52 = vld [vmem:[%s3 + $0x20] sm:$0xf]
    %v53 = vld [vmem:[%s3 + $0x24] sm:$0xf]
    %v54 = vld [vmem:[%s3 + $0x28] sm:$0xf]
    %v55 = vld [vmem:[%s3 + $0x2c] sm:$0xf]
    %v56 = vld [vmem:[%s3 + $0x30] sm:$0xf]
    %v57 = vld [vmem:[%s3 + $0x34] sm:$0xf]
    %v58 = vld [vmem:[%s3 + $0x38] sm:$0xf]
    %v59 = vld [vmem:[%s3 + $0x3c] sm:$0xf]
    %v60 = vld [vmem:[%s4] sm:$0x1]
    %v61 = vld [vmem:[%s5] sm:$0xf]
    %v62 = vld [vmem:[%s5 + $0x4] sm:$0xf]
    %v63 = vld [vmem:[%s5 + $0x8] sm:$0xf]
    %v64 = vld [vmem:[%s5 + $0xc] sm:$0xf]
    %v65 = vld [vmem:[%s5 + $0x10] sm:$0xf]
    %v66 = vld [vmem:[%s5 + $0x14] sm:$0xf]
    %v67 = vld [vmem:[%s5 + $0x18] sm:$0xf]
    %v68 = vld [vmem:[%s5 + $0x1c] sm:$0xf]
    %v69 = vld [vmem:[%s5 + $0x20] sm:$0xf]
    %v70 = vld [vmem:[%s5 + $0x24] sm:$0xf]
    %v71 = vld [vmem:[%s5 + $0x28] sm:$0xf]
    %v72 = vld [vmem:[%s5 + $0x2c] sm:$0xf]
    %v73 = vld [vmem:[%s5 + $0x30] sm:$0xf]
    %v74 = vld [vmem:[%s5 + $0x34] sm:$0xf]
    %v75 = vld [vmem:[%s5 + $0x38] sm:$0xf]
    %v76 = vld [vmem:[%s5 + $0x3c] sm:$0xf]
    %v77 = vld [vmem:[%s6] sm:$0x1]
    %v78 = vld [vmem:[%s0] sm:$0xff]
    %v79 = vpack.c.bf16 %v78, %v78
    %v81 = vlaneseq
    %v82 = vshrl.u32 %v81, 7
    %v83 = vsub.s32 0, %v82
    %v84 = vrot.slane %v43, %v83
    %v88 = vunpack.c.l.b16 %v41
    %v89 = vunpack.c.l.b16 %v42
    %v90 = vpack.c.b16 %v89, %v88
    %vm92 = vcmask 130048
    %v94 = vsel %vm92, %v79, 0
    %96 = vmatprep.subr.bf16.mxu0 0
    %97 = vmatpush1.bf16.msra.mxu0 %v90
    %98 = vmatprep.subr.bf16.mxu0 0
    %99 = vmatpush1.bf16.msra.mxu0 0
    %100 = vmatprep.subr.bf16.mxu0 0
    %101 = vmatpush1.bf16.msra.mxu0 0
    %102 = vmatprep.subr.bf16.mxu0 0
    %103 = vmatpush1.bf16.msra.mxu0 0
    %104 = vmatprep.subr.bf16.mxu0 0
    %105 = vmatpush1.bf16.msra.mxu0 0
    %106 = vmatprep.subr.bf16.mxu0 0
    %107 = vmatpush1.bf16.msra.mxu0 0
    %108 = vmatprep.subr.bf16.mxu0 0
    %109 = vmatpush1.bf16.msra.mxu0 0
    %110 = vmatprep.subr.bf16.mxu0 0
    %111 = vmatpush1.bf16.msra.mxu0 0
    %112 = vmatprep.subr.bf16.mxu0 0
    %113 = vmatpush1.bf16.msra.mxu0 0
    %114 = vmatprep.subr.bf16.mxu0 0
    %115 = vmatpush1.bf16.msra.mxu0 0
    %116 = vmatprep.subr.bf16.mxu0 0
    %117 = vmatpush1.bf16.msra.mxu0 0
    %118 = vmatprep.subr.bf16.mxu0 0
    %119 = vmatpush1.bf16.msra.mxu0 0
    %120 = vmatprep.subr.bf16.mxu0 0
    %121 = vmatpush1.bf16.msra.mxu0 0
    %122 = vmatprep.subr.bf16.mxu0 0
    %123 = vmatpush1.bf16.msra.mxu0 0
    %124 = vmatprep.subr.bf16.mxu0 0
    %125 = vmatpush1.bf16.msra.mxu0 0
    %126 = vmatprep.subr.bf16.mxu0 0
    %127 = vmatpush1.bf16.msra.mxu0 0
    %128 = vmatprep.mubr.bf16.mxu0 0
    %129 = vmatmul.mubr.bf16.gmra.mrb[0].mxu0 %v94
    %v130 = vpop.f32.mrb[0].mxu0
    %v131 = vadd.f32 %v84, %v130
    %v132 = vpop.f32.mrb[0].mxu0
    %v133 = vpop.f32.mrb[0].mxu0
    %v134 = vpop.f32.mrb[0].mxu0
    %135 = vdwg.mxu0
    %v136 = vmax.f32 %v131, 0.0
    %v137 = vpack.c.bf16 %v136, %v136
    %v139 = vlaneseq
    %v140 = vshrl.u32 %v139, 7
    %v141 = vsub.s32 0, %v140
    %v142 = vrot.slane %v60, %v141
    %v160 = vunpack.c.l.b16 %v44
    %v161 = vunpack.c.l.b16 %v45
    %v162 = vunpack.c.l.b16 %v46
    %v163 = vunpack.c.l.b16 %v47
    %v164 = vunpack.c.l.b16 %v48
    %v165 = vunpack.c.l.b16 %v49
    %v166 = vunpack.c.l.b16 %v50
    %v167 = vunpack.c.l.b16 %v51
    %v168 = vunpack.c.l.b16 %v52
    %v169 = vunpack.c.l.b16 %v53
    %v170 = vunpack.c.l.b16 %v54
    %v171 = vunpack.c.l.b16 %v55
    %v172 = vunpack.c.l.b16 %v56
    %v173 = vunpack.c.l.b16 %v57
    %v174 = vunpack.c.l.b16 %v58
    %v175 = vunpack.c.l.b16 %v59
    %v176 = vpack.c.b16 %v161, %v160
    %v177 = vpack.c.b16 %v163, %v162
    %v178 = vpack.c.b16 %v165, %v164
    %v179 = vpack.c.b16 %v167, %v166
    %v180 = vpack.c.b16 %v169, %v168
    %v181 = vpack.c.b16 %v171, %v170
    %v182 = vpack.c.b16 %v173, %v172
    %v183 = vpack.c.b16 %v175, %v174
    %192 = vmatprep.subr.bf16.mxu0 0
    %193 = vmatpush1.bf16.msra.mxu0 %v176
    %194 = vmatprep.subr.bf16.mxu0 0
    %195 = vmatpush1.bf16.msra.mxu0 %v177
    %196 = vmatprep.subr.bf16.mxu0 0
    %197 = vmatpush1.bf16.msra.mxu0 %v178
    %198 = vmatprep.subr.bf16.mxu0 0
    %199 = vmatpush1.bf16.msra.mxu0 %v179
    %200 = vmatprep.subr.bf16.mxu0 0
    %201 = vmatpush1.bf16.msra.mxu0 %v180
    %202 = vmatprep.subr.bf16.mxu0 0
    %203 = vmatpush1.bf16.msra.mxu0 %v181
    %204 = vmatprep.subr.bf16.mxu0 0
    %205 = vmatpush1.bf16.msra.mxu0 %v182
    %206 = vmatprep.subr.bf16.mxu0 0
    %207 = vmatpush1.bf16.msra.mxu0 %v183
    %208 = vmatprep.subr.bf16.mxu0 0
    %209 = vmatpush1.bf16.msra.mxu0 0
    %210 = vmatprep.subr.bf16.mxu0 0
    %211 = vmatpush1.bf16.msra.mxu0 0
    %212 = vmatprep.subr.bf16.mxu0 0
    %213 = vmatpush1.bf16.msra.mxu0 0
    %214 = vmatprep.subr.bf16.mxu0 0
    %215 = vmatpush1.bf16.msra.mxu0 0
    %216 = vmatprep.subr.bf16.mxu0 0
    %217 = vmatpush1.bf16.msra.mxu0 0
    %218 = vmatprep.subr.bf16.mxu0 0
    %219 = vmatpush1.bf16.msra.mxu0 0
    %220 = vmatprep.subr.bf16.mxu0 0
    %221 = vmatpush1.bf16.msra.mxu0 0
    %222 = vmatprep.subr.bf16.mxu0 0
    %223 = vmatpush1.bf16.msra.mxu0 0
    %224 = vmatprep.mubr.bf16.mxu0 0
    %225 = vmatmul.mubr.bf16.gmra.mrb[0].mxu0 %v137
    %v226 = vpop.f32.mrb[0].mxu0
    %v227 = vadd.f32 %v142, %v226
    %v228 = vpop.f32.mrb[0].mxu0
    %v229 = vpop.f32.mrb[0].mxu0
    %v230 = vpop.f32.mrb[0].mxu0
    %231 = vdwg.mxu0
    %v232 = vmax.f32 %v227, 0.0
    %v233 = vpack.c.bf16 %v232, %v232
    %v235 = vlaneseq
    %v236 = vshrl.u32 %v235, 7
    %v237 = vsub.s32 0, %v236
    %v238 = vrot.slane %v77, %v237
    %v256 = vunpack.c.l.b16 %v61
    %v257 = vunpack.c.l.b16 %v62
    %v258 = vunpack.c.l.b16 %v63
    %v259 = vunpack.c.l.b16 %v64
    %v260 = vunpack.c.l.b16 %v65
    %v261 = vunpack.c.l.b16 %v66
    %v262 = vunpack.c.l.b16 %v67
    %v263 = vunpack.c.l.b16 %v68
    %v264 = vunpack.c.l.b16 %v69
    %v265 = vunpack.c.l.b16 %v70
    %v266 = vunpack.c.l.b16 %v71
    %v267 = vunpack.c.l.b16 %v72
    %v268 = vunpack.c.l.b16 %v73
    %v269 = vunpack.c.l.b16 %v74
    %v270 = vunpack.c.l.b16 %v75
    %v271 = vunpack.c.l.b16 %v76
    %v272 = vpack.c.b16 %v257, %v256
    %v273 = vpack.c.b16 %v259, %v258
    %v274 = vpack.c.b16 %v261, %v260
    %v275 = vpack.c.b16 %v263, %v262
    %v276 = vpack.c.b16 %v265, %v264
    %v277 = vpack.c.b16 %v267, %v266
    %v278 = vpack.c.b16 %v269, %v268
    %v279 = vpack.c.b16 %v271, %v270
    %288 = vmatprep.subr.bf16.mxu0 0
    %289 = vmatpush1.bf16.msra.mxu0 %v272
    %290 = vmatprep.subr.bf16.mxu0 0
    %291 = vmatpush1.bf16.msra.mxu0 %v273
    %292 = vmatprep.subr.bf16.mxu0 0
    %293 = vmatpush1.bf16.msra.mxu0 %v274
    %294 = vmatprep.subr.bf16.mxu0 0
    %295 = vmatpush1.bf16.msra.mxu0 %v275
    %296 = vmatprep.subr.bf16.mxu0 0
    %297 = vmatpush1.bf16.msra.mxu0 %v276
    %298 = vmatprep.subr.bf16.mxu0 0
    %299 = vmatpush1.bf16.msra.mxu0 %v277
    %300 = vmatprep.subr.bf16.mxu0 0
    %301 = vmatpush1.bf16.msra.mxu0 %v278
    %302 = vmatprep.subr.bf16.mxu0 0
    %303 = vmatpush1.bf16.msra.mxu0 %v279
    %304 = vmatprep.subr.bf16.mxu0 0
    %305 = vmatpush1.bf16.msra.mxu0 0
    %306 = vmatprep.subr.bf16.mxu0 0
    %307 = vmatpush1.bf16.msra.mxu0 0
    %308 = vmatprep.subr.bf16.mxu0 0
    %309 = vmatpush1.bf16.msra.mxu0 0
    %310 = vmatprep.subr.bf16.mxu0 0
    %311 = vmatpush1.bf16.msra.mxu0 0
    %312 = vmatprep.subr.bf16.mxu0 0
    %313 = vmatpush1.bf16.msra.mxu0 0
    %314 = vmatprep.subr.bf16.mxu0 0
    %315 = vmatpush1.bf16.msra.mxu0 0
    %316 = vmatprep.subr.bf16.mxu0 0
    %317 = vmatpush1.bf16.msra.mxu0 0
    %318 = vmatprep.subr.bf16.mxu0 0
    %319 = vmatpush1.bf16.msra.mxu0 0
    %320 = vmatprep.mubr.bf16.mxu0 0
    %321 = vmatmul.mubr.bf16.gmra.mrb[0].mxu0 %v233
    %v322 = vpop.f32.mrb[0].mxu0
    %v323 = vadd.f32 %v238, %v322
    %v324 = vpop.f32.mrb[0].mxu0
    %v325 = vpop.f32.mrb[0].mxu0
    %v326 = vpop.f32.mrb[0].mxu0
    %327 = vdwg.mxu0
    %vm328 = vcmask 31744
    %329 = vst.msk [vmem:[%s7] sm:$0xff] %vm328, %v323
    // Predicated region
    $region34: #{qnetwork_forward.1} parent=1 // pred_check
      _
    $region35: #{qnetwork_forward.1} parent=1 // pred_check_branch
      %331 = sbr.rel (0) target = $region37
    $region36: #{qnetwork_forward.1} parent=1 // pred_region
      _
    $region37: #{qnetwork_forward.1} parent=1 // pred_fallthru
      _
    // Predicated region
    $region38: #{qnetwork_forward.1} parent=1 // pred_check
      _
    $region39: #{qnetwork_forward.1} parent=1 // pred_check_branch
      %333 = sbr.rel (0) target = $region41
    $region40: #{qnetwork_forward.1} parent=1 // pred_region
      _
    $region41: #{qnetwork_forward.1} parent=1 // pred_fallthru
      _
    %334 = vsyncpa [#allocation3], 1

</llo_original>
